<compile_context>
chip_gen: v7x
topology: tpu7x:2x2x1
jax: 0.10.0
libtpu: 0.0.40
codegen_flags: <defaults>
</compile_context>

<pallas_src>
import functools

import jax
import jax.numpy as jnp
from jax.experimental import pallas as pl
from jax.experimental.pallas import tpu as pltpu

LN_EPS = 1e-5


def ffn_kernel(x_ref, w1_ref, b1_ref, w2_ref, pdb_ref, seg_ref, o_ref, *, inv_d):
    """One (tile_rows, PACK*D) slab of packed tokens.

    x_ref  : (tile, Dp)      packed activations (Dp = PACK*D)
    w1_ref : (Dp, Fp)        block-diagonal W1^T   (Fp = PACK*F)
    b1_ref : (1, Fp)         tiled b1
    w2_ref : (Fp, Dp)        block-diagonal W2^T
    pdb_ref: (3, Dp)         rows: [b2, gamma, beta] (each tiled PACK times)
    seg_ref: (Dp, Dp)        block-diagonal ones -> per-token segment sums
    """
    x = x_ref[...]
    if x.dtype != jnp.float32:
        x = x.astype(jnp.float32)

    # conv1 (1x1) == x @ W1^T + b1, then ReLU
    h = jnp.dot(x, w1_ref[...], preferred_element_type=jnp.float32) + b1_ref[...]
    h = jnp.maximum(h, 0.0)
    # conv2 (1x1) == h @ W2^T + b2   (dropout = identity)
    y = jnp.dot(h, w2_ref[...], preferred_element_type=jnp.float32) + pdb_ref[0:1, :]

    # residual + per-token (per 32-lane segment) LayerNorm, two-pass variance.
    z = y + x
    seg = seg_ref[...]
    mean = jnp.dot(z, seg, preferred_element_type=jnp.float32) * inv_d
    d_c = z - mean
    var = jnp.dot(d_c * d_c, seg, preferred_element_type=jnp.float32) * inv_d
    zn = d_c * jax.lax.rsqrt(var + LN_EPS)
    o_ref[...] = (zn * pdb_ref[1:2, :] + pdb_ref[2:3, :]).astype(o_ref.dtype)


def cnn_feedforward(x, w1t, b1, w2t, b2, gamma, beta, *, tile_rows=None):
    """x: [seq, batch, embed_dim]. Returns the same shape.

    w1t: [D, F] (= conv1.weight[:, :, 0].T), b1: [F]
    w2t: [F, D] (= conv2.weight[:, :, 0].T), b2: [D]
    gamma/beta: [D] LayerNorm affine.
    """
    seq, batch, d = x.shape
    f = w1t.shape[1]
    n = seq * batch
    dtype = x.dtype

    # --- lane packing factor: fold PACK consecutive tokens into the lane dim ---
    pack = 128 // d if (d <= 128 and 128 % d == 0) else 1
    while pack > 1 and n % pack != 0:
        pack //= 2
    pack = max(pack, 1)

    dp, fp = pack * d, pack * f
    m = n // pack
    x2d = x.reshape(m, dp)

    # --- expanded, VMEM-resident parameters (tiny; built once per call) ---
    w1e = jnp.kron(jnp.eye(pack, dtype=jnp.float32), w1t.astype(jnp.float32))   # (Dp, Fp)
    w2e = jnp.kron(jnp.eye(pack, dtype=jnp.float32), w2t.astype(jnp.float32))   # (Fp, Dp)
    seg = jnp.kron(jnp.eye(pack, dtype=jnp.float32),
                   jnp.ones((d, d), jnp.float32))                               # (Dp, Dp)
    b1e = jnp.tile(b1.reshape(1, f).astype(jnp.float32), (1, pack))             # (1, Fp)
    pdb = jnp.concatenate(
        [jnp.tile(v.reshape(1, d).astype(jnp.float32), (1, pack))
         for v in (b2, gamma, beta)], axis=0)                                   # (3, Dp)

    # --- row-tile selection: ~2 MiB per f32 block, >=2 grid steps for large M ---
    bytes_per_row = dp * 4
    max_rows = max(8, ((2 * 1024 * 1024) // bytes_per_row) // 8 * 8)
    if tile_rows is None:
        if m <= 1024:
            tile_rows = m                                   # single-step fast path
        else:
            tile_rows = ((pl.cdiv(m, 2) + 7) // 8) * 8      # >=2 steps (v7x megacore)
        tile_rows = min(tile_rows, max_rows)
    grid = (pl.cdiv(m, tile_rows),)

    flops = 2 * m * dp * fp + 2 * m * fp * dp + 2 * 2 * m * dp * dp
    bytes_accessed = 4 * (2 * m * dp + dp * fp + fp * dp + fp + 3 * dp + dp * dp)
    cost = pl.CostEstimate(flops=int(flops), transcendentals=int(m * dp),
                           bytes_accessed=int(bytes_accessed))

    kernel = functools.partial(ffn_kernel, inv_d=1.0 / d)

    out2d = pl.pallas_call(
        kernel,
        out_shape=jax.ShapeDtypeStruct((m, dp), dtype),
        grid_spec=pltpu.PrefetchScalarGridSpec(
            num_scalar_prefetch=0,
            grid=grid,
            in_specs=[
                pl.BlockSpec((tile_rows, dp), lambda i: (i, 0)),   # x tile (streamed)
                pl.BlockSpec((dp, fp), lambda i: (0, 0)),          # W1e (resident)
                pl.BlockSpec((1, fp), lambda i: (0, 0)),           # b1e
                pl.BlockSpec((fp, dp), lambda i: (0, 0)),          # W2e (resident)
                pl.BlockSpec((3, dp), lambda i: (0, 0)),           # [b2; gamma; beta]
                pl.BlockSpec((dp, dp), lambda i: (0, 0)),          # segment-sum mask
            ],
            out_specs=pl.BlockSpec((tile_rows, dp), lambda i: (i, 0)),
        ),
        compiler_params=pltpu.CompilerParams(
            dimension_semantics=("parallel",)),
        cost_estimate=cost,
    )(x2d, w1e, b1e, w2e, pdb, seg)

    return out2d.reshape(seq, batch, d)


def reference(x, w1t, b1, w2t, b2, gamma, beta):
    """Pure-JAX reference matching the PyTorch forward (eval mode)."""
    h = jnp.maximum(x @ w1t + b1.reshape(1, -1), 0.0)
    y = h @ w2t + b2.reshape(1, -1)
    z = y + x
    mean = jnp.mean(z, axis=-1, keepdims=True)
    var = jnp.mean((z - mean) ** 2, axis=-1, keepdims=True)
    return (z - mean) * jax.lax.rsqrt(var + LN_EPS) * gamma.reshape(1, -1) + beta.reshape(1, -1)


if __name__ == "__main__":
    # Module hyperparams: encode_size=4 -> seq=16, embed_dim=32, feedforward_dim=64
    encode_size, embed_dim, feedforward_dim, batch = 4, 32, 64, 2
    seq = encode_size * encode_size

    key = jax.random.PRNGKey(0)
    kx, k1, k2, k3, k4, kx2 = jax.random.split(key, 6)

    x = jax.random.normal(kx, (seq, batch, embed_dim), dtype=jnp.float32)

    # conv1d weights are [out, in, 1] in PyTorch; stored transposed so the
    # kernel computes x @ W^T.
    w1t = jax.random.normal(k1, (embed_dim, feedforward_dim), jnp.float32) * 0.05
    b1 = jax.random.normal(k2, (feedforward_dim,), jnp.float32) * 0.01
    w2t = jax.random.normal(k3, (feedforward_dim, embed_dim), jnp.float32) * 0.05
    b2 = jax.random.normal(k4, (embed_dim,), jnp.float32) * 0.01
    gamma = jnp.ones((embed_dim,), jnp.float32)
    beta = jnp.zeros((embed_dim,), jnp.float32)

    # --- small shipped-size case (single grid step, packed lanes) ---
    out = cnn_feedforward(x, w1t, b1, w2t, b2, gamma, beta)
    out = jax.block_until_ready(out)
    ref = reference(x.reshape(-1, embed_dim), w1t, b1, w2t, b2, gamma, beta)
    ref = ref.reshape(seq, batch, embed_dim)
    assert out.shape == (seq, batch, embed_dim)
    assert jnp.allclose(out, ref, atol=1e-4, rtol=1e-4), float(jnp.max(jnp.abs(out - ref)))

    # --- multi-step grid with a ragged last block (no host-side padding) ---
    batch2 = 16
    x2 = jax.random.normal(kx2, (seq, batch2, embed_dim), dtype=jnp.float32)
    out2 = cnn_feedforward(x2, w1t, b1, w2t, b2, gamma, beta, tile_rows=24)
    out2 = jax.block_until_ready(out2)
    ref2 = reference(x2.reshape(-1, embed_dim), w1t, b1, w2t, b2, gamma, beta)
    ref2 = ref2.reshape(seq, batch2, embed_dim)
    assert jnp.allclose(out2, ref2, atol=1e-4, rtol=1e-4), float(jnp.max(jnp.abs(out2 - ref2)))

    print("KERNEL_OK")
</pallas_src>

<mosaic_0001>
module attributes {stable_mosaic.version = 11 : i64} {
  func.func @ffn_kernel(%arg0: i32, %arg1: memref<8x128xf32, #tpu.memory_space<vmem>>, %arg2: memref<128x256xf32, #tpu.memory_space<vmem>>, %arg3: memref<1x256xf32, #tpu.memory_space<vmem>>, %arg4: memref<256x128xf32, #tpu.memory_space<vmem>>, %arg5: memref<3x128xf32, #tpu.memory_space<vmem>>, %arg6: memref<128x128xf32, #tpu.memory_space<vmem>>, %arg7: memref<8x128xf32, #tpu.memory_space<vmem>>) attributes {dimension_semantics = [#tpu.dimension_semantics<parallel>], iteration_bounds = array<i64: 1>, scalar_prefetch = 0 : i64, scratch_operands = 0 : i64, tpu.core_type = #tpu.core_type<tc>, window_params = [{transform_indices = @transform_0, window_bounds = array<i64: 8, 128>}, {pipeline_mode = #tpu.pipeline_mode<synchronous>, transform_indices = @transform_1, window_bounds = array<i64: 128, 256>}, {pipeline_mode = #tpu.pipeline_mode<synchronous>, transform_indices = @transform_2, window_bounds = array<i64: 1, 256>}, {pipeline_mode = #tpu.pipeline_mode<synchronous>, transform_indices = @transform_3, window_bounds = array<i64: 256, 128>}, {pipeline_mode = #tpu.pipeline_mode<synchronous>, transform_indices = @transform_4, window_bounds = array<i64: 3, 128>}, {pipeline_mode = #tpu.pipeline_mode<synchronous>, transform_indices = @transform_5, window_bounds = array<i64: 128, 128>}, {transform_indices = @transform_6, window_bounds = array<i64: 8, 128>}]} {
    %c0 = arith.constant 0 : index
    %c0_0 = arith.constant 0 : index
    %0 = vector.load %arg1[%c0, %c0_0] : memref<8x128xf32, #tpu.memory_space<vmem>>, vector<8x128xf32>
    %c0_1 = arith.constant 0 : index
    %c0_2 = arith.constant 0 : index
    %1 = vector.load %arg2[%c0_1, %c0_2] : memref<128x256xf32, #tpu.memory_space<vmem>>, vector<128x256xf32>
    %cst = arith.constant dense<0.000000e+00> : vector<8x256xf32>
    %2 = tpu.matmul %0, %1, %cst {dimension_numbers = #tpu.dot_dimension_numbers<[1], [0], [0], [1], [0, 0, 1, 1], [], []>} : vector<8x128xf32>, vector<128x256xf32>, vector<8x256xf32> -> vector<8x256xf32>
    %c0_3 = arith.constant 0 : index
    %c0_4 = arith.constant 0 : index
    %3 = vector.load %arg3[%c0_3, %c0_4] : memref<1x256xf32, #tpu.memory_space<vmem>>, vector<1x256xf32>
    %4 = vector.broadcast %3 : vector<1x256xf32> to vector<8x256xf32>
    %5 = arith.addf %2, %4 : vector<8x256xf32>
    %cst_5 = arith.constant 0.000000e+00 : f32
    %6 = vector.broadcast %cst_5 : f32 to vector<8x256xf32>
    %7 = arith.maximumf %5, %6 : vector<8x256xf32>
    %c0_6 = arith.constant 0 : index
    %c0_7 = arith.constant 0 : index
    %8 = vector.load %arg4[%c0_6, %c0_7] : memref<256x128xf32, #tpu.memory_space<vmem>>, vector<256x128xf32>
    %cst_8 = arith.constant dense<0.000000e+00> : vector<8x128xf32>
    %9 = tpu.matmul %7, %8, %cst_8 {dimension_numbers = #tpu.dot_dimension_numbers<[1], [0], [0], [1], [0, 0, 1, 1], [], []>} : vector<8x256xf32>, vector<256x128xf32>, vector<8x128xf32> -> vector<8x128xf32>
    %c0_9 = arith.constant 0 : index
    %c0_10 = arith.constant 0 : index
    %10 = vector.load %arg5[%c0_9, %c0_10] : memref<3x128xf32, #tpu.memory_space<vmem>>, vector<1x128xf32>
    %11 = vector.broadcast %10 : vector<1x128xf32> to vector<8x128xf32>
    %12 = arith.addf %9, %11 : vector<8x128xf32>
    %13 = arith.addf %12, %0 : vector<8x128xf32>
    %c0_11 = arith.constant 0 : index
    %c0_12 = arith.constant 0 : index
    %14 = vector.load %arg6[%c0_11, %c0_12] : memref<128x128xf32, #tpu.memory_space<vmem>>, vector<128x128xf32>
    %cst_13 = arith.constant dense<0.000000e+00> : vector<8x128xf32>
    %15 = tpu.matmul %13, %14, %cst_13 {dimension_numbers = #tpu.dot_dimension_numbers<[1], [0], [0], [1], [0, 0, 1, 1], [], []>} : vector<8x128xf32>, vector<128x128xf32>, vector<8x128xf32> -> vector<8x128xf32>
    %cst_14 = arith.constant 3.125000e-02 : f32
    %16 = vector.broadcast %cst_14 : f32 to vector<8x128xf32>
    %17 = arith.mulf %15, %16 : vector<8x128xf32>
    %18 = arith.subf %13, %17 : vector<8x128xf32>
    %19 = arith.mulf %18, %18 : vector<8x128xf32>
    %cst_15 = arith.constant dense<0.000000e+00> : vector<8x128xf32>
    %20 = tpu.matmul %19, %14, %cst_15 {dimension_numbers = #tpu.dot_dimension_numbers<[1], [0], [0], [1], [0, 0, 1, 1], [], []>} : vector<8x128xf32>, vector<128x128xf32>, vector<8x128xf32> -> vector<8x128xf32>
    %cst_16 = arith.constant 3.125000e-02 : f32
    %21 = vector.broadcast %cst_16 : f32 to vector<8x128xf32>
    %22 = arith.mulf %20, %21 : vector<8x128xf32>
    %cst_17 = arith.constant 9.99999974E-6 : f32
    %23 = vector.broadcast %cst_17 : f32 to vector<8x128xf32>
    %24 = arith.addf %22, %23 : vector<8x128xf32>
    %25 = math.rsqrt %24 : vector<8x128xf32>
    %26 = arith.mulf %18, %25 : vector<8x128xf32>
    %c1 = arith.constant 1 : index
    %c0_18 = arith.constant 0 : index
    %27 = vector.load %arg5[%c1, %c0_18] : memref<3x128xf32, #tpu.memory_space<vmem>>, vector<1x128xf32>
    %28 = vector.broadcast %27 : vector<1x128xf32> to vector<8x128xf32>
    %29 = arith.mulf %26, %28 : vector<8x128xf32>
    %c2 = arith.constant 2 : index
    %c0_19 = arith.constant 0 : index
    %30 = vector.load %arg5[%c2, %c0_19] : memref<3x128xf32, #tpu.memory_space<vmem>>, vector<1x128xf32>
    %31 = vector.broadcast %30 : vector<1x128xf32> to vector<8x128xf32>
    %32 = arith.addf %29, %31 : vector<8x128xf32>
    %c0_20 = arith.constant 0 : index
    %c0_21 = arith.constant 0 : index
    %33 = vector.load %arg7[%c0_20, %c0_21] : memref<8x128xf32, #tpu.memory_space<vmem>>, vector<8x128xf32>
    tpu.vector_store %arg7[%c0_20, %c0_21], %32 {strides = array<i32>} : memref<8x128xf32, #tpu.memory_space<vmem>>, vector<8x128xf32>,
    return
  }
  func.func @transform_0(%arg0: i32) -> (i32, i32) {
    %c0_i32 = arith.constant 0 : i32
    %c0_i32_0 = arith.constant 0 : i32
    return %arg0, %c0_i32 : i32, i32
  }
  func.func @transform_1(%arg0: i32) -> (i32, i32) {
    %c0_i32 = arith.constant 0 : i32
    %c0_i32_0 = arith.constant 0 : i32
    %c0_i32_1 = arith.constant 0 : i32
    return %c0_i32, %c0_i32_0 : i32, i32
  }
  func.func @transform_2(%arg0: i32) -> (i32, i32) {
    %c0_i32 = arith.constant 0 : i32
    %c0_i32_0 = arith.constant 0 : i32
    %c0_i32_1 = arith.constant 0 : i32
    return %c0_i32, %c0_i32_0 : i32, i32
  }
  func.func @transform_3(%arg0: i32) -> (i32, i32) {
    %c0_i32 = arith.constant 0 : i32
    %c0_i32_0 = arith.constant 0 : i32
    %c0_i32_1 = arith.constant 0 : i32
    return %c0_i32, %c0_i32_0 : i32, i32
  }
  func.func @transform_4(%arg0: i32) -> (i32, i32) {
    %c0_i32 = arith.constant 0 : i32
    %c0_i32_0 = arith.constant 0 : i32
    %c0_i32_1 = arith.constant 0 : i32
    return %c0_i32, %c0_i32_0 : i32, i32
  }
  func.func @transform_5(%arg0: i32) -> (i32, i32) {
    %c0_i32 = arith.constant 0 : i32
    %c0_i32_0 = arith.constant 0 : i32
    %c0_i32_1 = arith.constant 0 : i32
    return %c0_i32, %c0_i32_0 : i32, i32
  }
  func.func @transform_6(%arg0: i32) -> (i32, i32) {
    %c0_i32 = arith.constant 0 : i32
    %c0_i32_0 = arith.constant 0 : i32
    return %arg0, %c0_i32 : i32, i32
  }
}

</mosaic_0001>

<llo_original>
// kernel: tpu_custom_call.1
$region0: #{tpu_custom_call.1}
  #allocation0 [shape = 'u32[]', space=smem, size = 0x4, offset = 0x4, fixed_abs, tag = 'smem constant byte address 0x4 - core index']
  #allocation1 [shape = 'u32[144,128]{1,0:T(1,128)}', space=vmem, size = 0x12000, scoped, tag = 'internal scratch']
  %s0 = inlined_call_operand.hbm [shape: f32[8,128], index: 0, kind: input, shape index: {}]
  %s1 = inlined_call_operand.hbm [shape: f32[128,256], index: 1, kind: input, shape index: {}]
  %s2 = inlined_call_operand.vmem [shape: f32[1,256], index: 2, kind: input, shape index: {}]
  %s3 = inlined_call_operand.hbm [shape: f32[256,128], index: 3, kind: input, shape index: {}]
  %s4 = inlined_call_operand.vmem [shape: f32[3,128], index: 4, kind: input, shape index: {}]
  %s5 = inlined_call_operand.hbm [shape: f32[128,128], index: 5, kind: input, shape index: {}]
  %s6 = inlined_call_operand.hbm [shape: f32[8,128], index: 6, kind: output, shape index: {}]
  %s7 = sld [smem:[#allocation0]]
  $region50: #{tpu_custom_call.1} parent=0
    _
  %s9 = ssub.s32 1, %s7
  %s10 = scalar_select 0, %s9, %s7
  $region1: #{tpu_custom_call.1} parent=0
    #allocation2 [shape = 'u8[4096]{0}', space=vmem, size = 0x1000, scoped, tag = 'input window, operand 0, single buffered']
    #allocation3 [shape = 's32[1]{0}', space=sflag, size = 0x4, scoped, tag = 'scoped memory for tpu_custom_call.1']
    #allocation4 [shape = 's32[1]{0}', space=sflag, size = 0x4, scoped, tag = 'scoped memory for tpu_custom_call.1']
    #allocation5 [shape = 'u8[131072]{0}', space=vmem, size = 0x20000, scoped, tag = 'input window, operand 1, single buffered']
    #allocation6 [shape = 's32[1]{0}', space=sflag, size = 0x4, scoped, tag = 'scoped memory for tpu_custom_call.1']
    #allocation7 [shape = 'u8[131072]{0}', space=vmem, size = 0x20000, scoped, tag = 'input window, operand 3, single buffered']
    #allocation8 [shape = 'u8[65536]{0}', space=vmem, size = 0x10000, scoped, tag = 'input window, operand 5, single buffered']
    #allocation9 [shape = 's32[1]{0}', space=sflag, size = 0x4, scoped, tag = 'scoped memory for tpu_custom_call.1']
    #allocation10 [shape = 'u8[4096]{0}', space=vmem, size = 0x1000, scoped, tag = 'output window, operand 0, single buffered']
    %11 = vsyncpa [#allocation3], 0
    %12 = vsyncpa [#allocation6], 0
    %13 = vsyncpa [#allocation9], 0
    %14 = vsyncpa [#allocation4], 0
    // Predicated region
    $region2: #{tpu_custom_call.1} parent=1 // pred_check
      _
    $region3: #{tpu_custom_call.1} parent=1 // pred_check_branch
      %16 = sbr.rel (0) target = $region5
    $region4: #{tpu_custom_call.1} parent=1 // pred_region
      %s18 = ssub.s32 128, 128
      %19 = vsyncadd [#allocation3], %s18
      %s21 = sshll.u32 [#allocation2], 4
      %s22 = int_to_ptr.vmem [resolvable:$true] %s21
      %24 = dma.hbm_to_vmem [thread:$0]  %s0, 128, %s22, [#allocation3]
    $region5: #{tpu_custom_call.1} parent=1 // pred_fallthru
      _
    // Predicated region
    $region6: #{tpu_custom_call.1} parent=1 // pred_check
      _
    $region7: #{tpu_custom_call.1} parent=1 // pred_check_branch
      %26 = sbr.rel (0) target = $region9
    $region8: #{tpu_custom_call.1} parent=1 // pred_region
      %s28 = ssub.s32 4096, 4096
      %29 = vsyncadd [#allocation6], %s28
      %s30 = sshll.u32 [#allocation5], 4
      %s31 = int_to_ptr.vmem [resolvable:$true] %s30
      %36 = dma.hbm_to_vmem [thread:$0]  %s1, 4096, %s31, [#allocation6], 256, 256, 16
    $region9: #{tpu_custom_call.1} parent=1 // pred_fallthru
      _
    // Predicated region
    $region10: #{tpu_custom_call.1} parent=1 // pred_check
      _
    $region11: #{tpu_custom_call.1} parent=1 // pred_check_branch
      %38 = sbr.rel (0) target = $region13
    $region12: #{tpu_custom_call.1} parent=1 // pred_region
      _
    $region13: #{tpu_custom_call.1} parent=1 // pred_fallthru
      _
    // Predicated region
    $region14: #{tpu_custom_call.1} parent=1 // pred_check
      _
    $region15: #{tpu_custom_call.1} parent=1 // pred_check_branch
      %40 = sbr.rel (0) target = $region17
    $region16: #{tpu_custom_call.1} parent=1 // pred_region
      %s42 = ssub.s32 4096, 4096
      %43 = vsyncadd [#allocation6], %s42
      %s44 = sshll.u32 [#allocation7], 4
      %s45 = int_to_ptr.vmem [resolvable:$true] %s44
      %50 = dma.hbm_to_vmem [thread:$0]  %s3, 4096, %s45, [#allocation6], 128, 128, 8
    $region17: #{tpu_custom_call.1} parent=1 // pred_fallthru
      _
    // Predicated region
    $region18: #{tpu_custom_call.1} parent=1 // pred_check
      _
    $region19: #{tpu_custom_call.1} parent=1 // pred_check_branch
      %52 = sbr.rel (0) target = $region21
    $region20: #{tpu_custom_call.1} parent=1 // pred_region
      _
    $region21: #{tpu_custom_call.1} parent=1 // pred_fallthru
      _
    // Predicated region
    $region22: #{tpu_custom_call.1} parent=1 // pred_check
      _
    $region23: #{tpu_custom_call.1} parent=1 // pred_check_branch
      %54 = sbr.rel (0) target = $region25
    $region24: #{tpu_custom_call.1} parent=1 // pred_region
      %s56 = ssub.s32 2048, 2048
      %57 = vsyncadd [#allocation9], %s56
      %s58 = sshll.u32 [#allocation8], 4
      %s59 = int_to_ptr.vmem [resolvable:$true] %s58
      %64 = dma.hbm_to_vmem [thread:$0]  %s5, 2048, %s59, [#allocation9], 128, 128, 8
    $region25: #{tpu_custom_call.1} parent=1 // pred_fallthru
      _
    // Predicated region
    $region26: #{tpu_custom_call.1} parent=1 // pred_check
      _
    $region27: #{tpu_custom_call.1} parent=1 // pred_check_branch
      %66 = sbr.rel (0) target = $region29
    $region28: #{tpu_custom_call.1} parent=1 // pred_region
      %67 = dma.done [#allocation3], 128
    $region29: #{tpu_custom_call.1} parent=1 // pred_fallthru
      _
    // Predicated region
    $region30: #{tpu_custom_call.1} parent=1 // pred_check
      _
    $region31: #{tpu_custom_call.1} parent=1 // pred_check_branch
      %69 = sbr.rel (0) target = $region33
    $region32: #{tpu_custom_call.1} parent=1 // pred_region
      %70 = dma.done [#allocation6], 4096
    $region33: #{tpu_custom_call.1} parent=1 // pred_fallthru
      _
    // Predicated region
    $region34: #{tpu_custom_call.1} parent=1 // pred_check
      _
    $region35: #{tpu_custom_call.1} parent=1 // pred_check_branch
      %72 = sbr.rel (0) target = $region37
    $region36: #{tpu_custom_call.1} parent=1 // pred_region
      %73 = dma.done [#allocation6], 4096
    $region37: #{tpu_custom_call.1} parent=1 // pred_fallthru
      _
    // Predicated region
    $region38: #{tpu_custom_call.1} parent=1 // pred_check
      _
    $region39: #{tpu_custom_call.1} parent=1 // pred_check_branch
      %75 = sbr.rel (0) target = $region41
    $region40: #{tpu_custom_call.1} parent=1 // pred_region
      %76 = dma.done [#allocation9], 2048
    $region41: #{tpu_custom_call.1} parent=1 // pred_fallthru
      _
    %v77 = vld [vmem:[#allocation2] sm:$0xff]
    %v78 = vld [vmem:[#allocation5] sm:$0xff]
    %v79 = vld [vmem:[#allocation5 + $0x8] sm:$0xff]
    %v80 = vld [vmem:[#allocation5 + $0x10] sm:$0xff]
    %v81 = vld [vmem:[#allocation5 + $0x18] sm:$0xff]
    %v82 = vld [vmem:[#allocation5 + $0x20] sm:$0xff]
    %v83 = vld [vmem:[#allocation5 + $0x28] sm:$0xff]
    %v84 = vld [vmem:[#allocation5 + $0x30] sm:$0xff]
    %v85 = vld [vmem:[#allocation5 + $0x38] sm:$0xff]
    %v86 = vld [vmem:[#allocation5 + $0x40] sm:$0xff]
    %v87 = vld [vmem:[#allocation5 + $0x48] sm:$0xff]
    %v88 = vld [vmem:[#allocation5 + $0x50] sm:$0xff]
    %v89 = vld [vmem:[#allocation5 + $0x58] sm:$0xff]
    %v90 = vld [vmem:[#allocation5 + $0x60] sm:$0xff]
    %v91 = vld [vmem:[#allocation5 + $0x68] sm:$0xff]
    %v92 = vld [vmem:[#allocation5 + $0x70] sm:$0xff]
    %v93 = vld [vmem:[#allocation5 + $0x78] sm:$0xff]
    %v94 = vld [vmem:[#allocation5 + $0x80] sm:$0xff]
    %v95 = vld [vmem:[#allocation5 + $0x88] sm:$0xff]
    %v96 = vld [vmem:[#allocation5 + $0x90] sm:$0xff]
    %v97 = vld [vmem:[#allocation5 + $0x98] sm:$0xff]
    %v98 = vld [vmem:[#allocation5 + $0xa0] sm:$0xff]
    %v99 = vld [vmem:[#allocation5 + $0xa8] sm:$0xff]
    %v100 = vld [vmem:[#allocation5 + $0xb0] sm:$0xff]
    %v101 = vld [vmem:[#allocation5 + $0xb8] sm:$0xff]
    %v102 = vld [vmem:[#allocation5 + $0xc0] sm:$0xff]
    %v103 = vld [vmem:[#allocation5 + $0xc8] sm:$0xff]
    %v104 = vld [vmem:[#allocation5 + $0xd0] sm:$0xff]
    %v105 = vld [vmem:[#allocation5 + $0xd8] sm:$0xff]
    %v106 = vld [vmem:[#allocation5 + $0xe0] sm:$0xff]
    %v107 = vld [vmem:[#allocation5 + $0xe8] sm:$0xff]
    %v108 = vld [vmem:[#allocation5 + $0xf0] sm:$0xff]
    %v109 = vld [vmem:[#allocation5 + $0xf8] sm:$0xff]
    %v110 = vld [vmem:[%s2] sm:$0x3]
    %v112 = vlaneseq
    %v113 = vshrl.u32 %v112, 7
    %v114 = vsub.s32 0, %v113
    %v115 = vrot.slane %v110, %v114
    %v116 = vlaneseq
    %v117 = vshrl.u32 %v116, 7
    %v118 = vsub.s32 1, %v117
    %v119 = vrot.slane %v110, %v118
    %122 = vmatprep.subr.mxu0 %v79
    %123 = vmatpush1.msra.mxu0 %v78
    %124 = vmatprep.subr.mxu0 %v81
    %125 = vmatpush1.msra.mxu0 %v80
    %126 = vmatprep.subr.mxu0 %v83
    %127 = vmatpush1.msra.mxu0 %v82
    %128 = vmatprep.subr.mxu0 %v85
    %129 = vmatpush1.msra.mxu0 %v84
    %130 = vmatprep.subr.mxu0 %v87
    %131 = vmatpush1.msra.mxu0 %v86
    %132 = vmatprep.subr.mxu0 %v89
    %133 = vmatpush1.msra.mxu0 %v88
    %134 = vmatprep.subr.mxu0 %v91
    %135 = vmatpush1.msra.mxu0 %v90
    %136 = vmatprep.subr.mxu0 %v93
    %137 = vmatpush1.msra.mxu0 %v92
    %138 = vmatprep.subr.mxu0 %v95
    %139 = vmatpush1.msra.mxu0 %v94
    %140 = vmatprep.subr.mxu0 %v97
    %141 = vmatpush1.msra.mxu0 %v96
    %142 = vmatprep.subr.mxu0 %v99
    %143 = vmatpush1.msra.mxu0 %v98
    %144 = vmatprep.subr.mxu0 %v101
    %145 = vmatpush1.msra.mxu0 %v100
    %146 = vmatprep.subr.mxu0 %v103
    %147 = vmatpush1.msra.mxu0 %v102
    %148 = vmatprep.subr.mxu0 %v105
    %149 = vmatpush1.msra.mxu0 %v104
    %150 = vmatprep.subr.mxu0 %v107
    %151 = vmatpush1.msra.mxu0 %v106
    %152 = vmatprep.subr.mxu0 %v109
    %153 = vmatpush1.msra.mxu0 %v108
    %154 = vmatprep.subr.mxu0 0.0
    %155 = vmatpush1.msra.mxu0 0.0
    %156 = vmatprep.subr.mxu0 0.0
    %157 = vmatpush1.msra.mxu0 0.0
    %158 = vmatprep.subr.mxu0 0.0
    %159 = vmatpush1.msra.mxu0 0.0
    %160 = vmatprep.subr.mxu0 0.0
    %161 = vmatpush1.msra.mxu0 0.0
    %162 = vmatprep.subr.mxu0 0.0
    %163 = vmatpush1.msra.mxu0 0.0
    %164 = vmatprep.subr.mxu0 0.0
    %165 = vmatpush1.msra.mxu0 0.0
    %166 = vmatprep.subr.mxu0 0.0
    %167 = vmatpush1.msra.mxu0 0.0
    %168 = vmatprep.subr.mxu0 0.0
    %169 = vmatpush1.msra.mxu0 0.0
    %170 = vmatprep.subr.mxu0 0.0
    %171 = vmatpush1.msra.mxu0 0.0
    %172 = vmatprep.subr.mxu0 0.0
    %173 = vmatpush1.msra.mxu0 0.0
    %174 = vmatprep.subr.mxu0 0.0
    %175 = vmatpush1.msra.mxu0 0.0
    %176 = vmatprep.subr.mxu0 0.0
    %177 = vmatpush1.msra.mxu0 0.0
    %178 = vmatprep.subr.mxu0 0.0
    %179 = vmatpush1.msra.mxu0 0.0
    %180 = vmatprep.subr.mxu0 0.0
    %181 = vmatpush1.msra.mxu0 0.0
    %182 = vmatprep.subr.mxu0 0.0
    %183 = vmatpush1.msra.mxu0 0.0
    %184 = vmatprep.subr.mxu0 0.0
    %185 = vmatpush1.msra.mxu0 0.0
    %186 = vmatprep.mubr.f32.mxu0 0.0
    %187 = vmatmul.mubr.f32.gmra.mrb[0].mxu0 %v77
    %v188 = vpop.f32.mrb[0].mxu0
    %v189 = vadd.f32 %v115, %v188
    %v190 = vpop.f32.mrb[0].mxu0
    %v191 = vadd.f32 %v119, %v190
    %192 = vdwg.mxu0
    %v193 = vmax.f32 %v189, 0.0
    %v194 = vmax.f32 %v191, 0.0
    %v195 = vld [vmem:[#allocation7] sm:$0xff]
    %v196 = vld [vmem:[#allocation7 + $0x8] sm:$0xff]
    %v197 = vld [vmem:[#allocation7 + $0x10] sm:$0xff]
    %v198 = vld [vmem:[#allocation7 + $0x18] sm:$0xff]
    %v199 = vld [vmem:[#allocation7 + $0x20] sm:$0xff]
    %v200 = vld [vmem:[#allocation7 + $0x28] sm:$0xff]
    %v201 = vld [vmem:[#allocation7 + $0x30] sm:$0xff]
    %v202 = vld [vmem:[#allocation7 + $0x38] sm:$0xff]
    %v203 = vld [vmem:[#allocation7 + $0x40] sm:$0xff]
    %v204 = vld [vmem:[#allocation7 + $0x48] sm:$0xff]
    %v205 = vld [vmem:[#allocation7 + $0x50] sm:$0xff]
    %v206 = vld [vmem:[#allocation7 + $0x58] sm:$0xff]
    %v207 = vld [vmem:[#allocation7 + $0x60] sm:$0xff]
    %v208 = vld [vmem:[#allocation7 + $0x68] sm:$0xff]
    %v209 = vld [vmem:[#allocation7 + $0x70] sm:$0xff]
    %v210 = vld [vmem:[#allocation7 + $0x78] sm:$0xff]
    %v211 = vld [vmem:[#allocation7 + $0x80] sm:$0xff]
    %v212 = vld [vmem:[#allocation7 + $0x88] sm:$0xff]
    %v213 = vld [vmem:[#allocation7 + $0x90] sm:$0xff]
    %v214 = vld [vmem:[#allocation7 + $0x98] sm:$0xff]
    %v215 = vld [vmem:[#allocation7 + $0xa0] sm:$0xff]
    %v216 = vld [vmem:[#allocation7 + $0xa8] sm:$0xff]
    %v217 = vld [vmem:[#allocation7 + $0xb0] sm:$0xff]
    %v218 = vld [vmem:[#allocation7 + $0xb8] sm:$0xff]
    %v219 = vld [vmem:[#allocation7 + $0xc0] sm:$0xff]
    %v220 = vld [vmem:[#allocation7 + $0xc8] sm:$0xff]
    %v221 = vld [vmem:[#allocation7 + $0xd0] sm:$0xff]
    %v222 = vld [vmem:[#allocation7 + $0xd8] sm:$0xff]
    %v223 = vld [vmem:[#allocation7 + $0xe0] sm:$0xff]
    %v224 = vld [vmem:[#allocation7 + $0xe8] sm:$0xff]
    %v225 = vld [vmem:[#allocation7 + $0xf0] sm:$0xff]
    %v226 = vld [vmem:[#allocation7 + $0xf8] sm:$0xff]
    %v227 = vld [vmem:[%s4] sm:$0x1]
    %v228 = vlaneseq
    %v229 = vshrl.u32 %v228, 7
    %v230 = vsub.s32 0, %v229
    %v231 = vrot.slane %v227, %v230
    %232 = vmatprep.subr.mxu0 0.0
    %233 = vmatpush1.msra.mxu0 %v195
    %234 = vmatprep.subr.mxu0 0.0
    %235 = vmatpush1.msra.mxu0 %v196
    %236 = vmatprep.subr.mxu0 0.0
    %237 = vmatpush1.msra.mxu0 %v197
    %238 = vmatprep.subr.mxu0 0.0
    %239 = vmatpush1.msra.mxu0 %v198
    %240 = vmatprep.subr.mxu0 0.0
    %241 = vmatpush1.msra.mxu0 %v199
    %242 = vmatprep.subr.mxu0 0.0
    %243 = vmatpush1.msra.mxu0 %v200
    %244 = vmatprep.subr.mxu0 0.0
    %245 = vmatpush1.msra.mxu0 %v201
    %246 = vmatprep.subr.mxu0 0.0
    %247 = vmatpush1.msra.mxu0 %v202
    %248 = vmatprep.subr.mxu0 0.0
    %249 = vmatpush1.msra.mxu0 %v203
    %250 = vmatprep.subr.mxu0 0.0
    %251 = vmatpush1.msra.mxu0 %v204
    %252 = vmatprep.subr.mxu0 0.0
    %253 = vmatpush1.msra.mxu0 %v205
    %254 = vmatprep.subr.mxu0 0.0
    %255 = vmatpush1.msra.mxu0 %v206
    %256 = vmatprep.subr.mxu0 0.0
    %257 = vmatpush1.msra.mxu0 %v207
    %258 = vmatprep.subr.mxu0 0.0
    %259 = vmatpush1.msra.mxu0 %v208
    %260 = vmatprep.subr.mxu0 0.0
    %261 = vmatpush1.msra.mxu0 %v209
    %262 = vmatprep.subr.mxu0 0.0
    %263 = vmatpush1.msra.mxu0 %v210
    %264 = vmatprep.subr.mxu0 0.0
    %265 = vmatpush1.msra.mxu0 %v211
    %266 = vmatprep.subr.mxu0 0.0
    %267 = vmatpush1.msra.mxu0 %v212
    %268 = vmatprep.subr.mxu0 0.0
    %269 = vmatpush1.msra.mxu0 %v213
    %270 = vmatprep.subr.mxu0 0.0
    %271 = vmatpush1.msra.mxu0 %v214
    %272 = vmatprep.subr.mxu0 0.0
    %273 = vmatpush1.msra.mxu0 %v215
    %274 = vmatprep.subr.mxu0 0.0
    %275 = vmatpush1.msra.mxu0 %v216
    %276 = vmatprep.subr.mxu0 0.0
    %277 = vmatpush1.msra.mxu0 %v217
    %278 = vmatprep.subr.mxu0 0.0
    %279 = vmatpush1.msra.mxu0 %v218
    %280 = vmatprep.subr.mxu0 0.0
    %281 = vmatpush1.msra.mxu0 %v219
    %282 = vmatprep.subr.mxu0 0.0
    %283 = vmatpush1.msra.mxu0 %v220
    %284 = vmatprep.subr.mxu0 0.0
    %285 = vmatpush1.msra.mxu0 %v221
    %286 = vmatprep.subr.mxu0 0.0
    %287 = vmatpush1.msra.mxu0 %v222
    %288 = vmatprep.subr.mxu0 0.0
    %289 = vmatpush1.msra.mxu0 %v223
    %290 = vmatprep.subr.mxu0 0.0
    %291 = vmatpush1.msra.mxu0 %v224
    %292 = vmatprep.subr.mxu0 0.0
    %293 = vmatpush1.msra.mxu0 %v225
    %294 = vmatprep.subr.mxu0 0.0
    %295 = vmatpush1.msra.mxu0 %v226
    %296 = vmatprep.mubr.f32.mxu0 %v194
    %297 = vmatmul.mubr.f32.gmra.mrb[0].mxu0 %v193
    %v298 = vpop.f32.mrb[0].mxu0
    %v299 = vadd.f32 %v231, %v298
    %v300 = vpop.f32.mrb[0].mxu0
    %301 = vdwg.mxu0
    %v302 = vadd.f32 %v299, %v77
    %v303 = vld [vmem:[#allocation8] sm:$0xff]
    %v304 = vld [vmem:[#allocation8 + $0x8] sm:$0xff]
    %v305 = vld [vmem:[#allocation8 + $0x10] sm:$0xff]
    %v306 = vld [vmem:[#allocation8 + $0x18] sm:$0xff]
    %v307 = vld [vmem:[#allocation8 + $0x20] sm:$0xff]
    %v308 = vld [vmem:[#allocation8 + $0x28] sm:$0xff]
    %v309 = vld [vmem:[#allocation8 + $0x30] sm:$0xff]
    %v310 = vld [vmem:[#allocation8 + $0x38] sm:$0xff]
    %v311 = vld [vmem:[#allocation8 + $0x40] sm:$0xff]
    %v312 = vld [vmem:[#allocation8 + $0x48] sm:$0xff]
    %v313 = vld [vmem:[#allocation8 + $0x50] sm:$0xff]
    %v314 = vld [vmem:[#allocation8 + $0x58] sm:$0xff]
    %v315 = vld [vmem:[#allocation8 + $0x60] sm:$0xff]
    %v316 = vld [vmem:[#allocation8 + $0x68] sm:$0xff]
    %v317 = vld [vmem:[#allocation8 + $0x70] sm:$0xff]
    %v318 = vld [vmem:[#allocation8 + $0x78] sm:$0xff]
    %319 = vmatprep.subr.mxu0 0.0
    %320 = vmatpush1.msra.mxu0 %v303
    %321 = vmatprep.subr.mxu0 0.0
    %322 = vmatpush1.msra.mxu0 %v304
    %323 = vmatprep.subr.mxu0 0.0
    %324 = vmatpush1.msra.mxu0 %v305
    %325 = vmatprep.subr.mxu0 0.0
    %326 = vmatpush1.msra.mxu0 %v306
    %327 = vmatprep.subr.mxu0 0.0
    %328 = vmatpush1.msra.mxu0 %v307
    %329 = vmatprep.subr.mxu0 0.0
    %330 = vmatpush1.msra.mxu0 %v308
    %331 = vmatprep.subr.mxu0 0.0
    %332 = vmatpush1.msra.mxu0 %v309
    %333 = vmatprep.subr.mxu0 0.0
    %334 = vmatpush1.msra.mxu0 %v310
    %335 = vmatprep.subr.mxu0 0.0
    %336 = vmatpush1.msra.mxu0 %v311
    %337 = vmatprep.subr.mxu0 0.0
    %338 = vmatpush1.msra.mxu0 %v312
    %339 = vmatprep.subr.mxu0 0.0
    %340 = vmatpush1.msra.mxu0 %v313
    %341 = vmatprep.subr.mxu0 0.0
    %342 = vmatpush1.msra.mxu0 %v314
    %343 = vmatprep.subr.mxu0 0.0
    %344 = vmatpush1.msra.mxu0 %v315
    %345 = vmatprep.subr.mxu0 0.0
    %346 = vmatpush1.msra.mxu0 %v316
    %347 = vmatprep.subr.mxu0 0.0
    %348 = vmatpush1.msra.mxu0 %v317
    %349 = vmatprep.subr.mxu0 0.0
    %350 = vmatpush1.msra.mxu0 %v318
    %351 = vmatprep.subr.mxu0 0.0
    %352 = vmatpush1.msra.mxu0 0.0
    %353 = vmatprep.subr.mxu0 0.0
    %354 = vmatpush1.msra.mxu0 0.0
    %355 = vmatprep.subr.mxu0 0.0
    %356 = vmatpush1.msra.mxu0 0.0
    %357 = vmatprep.subr.mxu0 0.0
    %358 = vmatpush1.msra.mxu0 0.0
    %359 = vmatprep.subr.mxu0 0.0
    %360 = vmatpush1.msra.mxu0 0.0
    %361 = vmatprep.subr.mxu0 0.0
    %362 = vmatpush1.msra.mxu0 0.0
    %363 = vmatprep.subr.mxu0 0.0
    %364 = vmatpush1.msra.mxu0 0.0
    %365 = vmatprep.subr.mxu0 0.0
    %366 = vmatpush1.msra.mxu0 0.0
    %367 = vmatprep.subr.mxu0 0.0
    %368 = vmatpush1.msra.mxu0 0.0
    %369 = vmatprep.subr.mxu0 0.0
    %370 = vmatpush1.msra.mxu0 0.0
    %371 = vmatprep.subr.mxu0 0.0
    %372 = vmatpush1.msra.mxu0 0.0
    %373 = vmatprep.subr.mxu0 0.0
    %374 = vmatpush1.msra.mxu0 0.0
    %375 = vmatprep.subr.mxu0 0.0
    %376 = vmatpush1.msra.mxu0 0.0
    %377 = vmatprep.subr.mxu0 0.0
    %378 = vmatpush1.msra.mxu0 0.0
    %379 = vmatprep.subr.mxu0 0.0
    %380 = vmatpush1.msra.mxu0 0.0
    %381 = vmatprep.subr.mxu0 0.0
    %382 = vmatpush1.msra.mxu0 0.0
    %383 = vmatprep.mubr.f32.mxu0 0.0
    %384 = vmatmul.mubr.f32.gmra.mrb[0].mxu0 %v302
    %v385 = vpop.f32.mrb[0].mxu0
    %v386 = vadd.f32 0.0, %v385
    %v387 = vpop.f32.mrb[0].mxu0
    %388 = vdwg.mxu0
    %v389 = vmul.f32 %v386, 0.03125
    %v390 = vsub.f32 %v302, %v389
    %v391 = vmul.f32 %v390, %v390
    %392 = vmatprep.subr.mxu0 0.0
    %393 = vmatpush1.msra.mxu0 %v303
    %394 = vmatprep.subr.mxu0 0.0
    %395 = vmatpush1.msra.mxu0 %v304
    %396 = vmatprep.subr.mxu0 0.0
    %397 = vmatpush1.msra.mxu0 %v305
    %398 = vmatprep.subr.mxu0 0.0
    %399 = vmatpush1.msra.mxu0 %v306
    %400 = vmatprep.subr.mxu0 0.0
    %401 = vmatpush1.msra.mxu0 %v307
    %402 = vmatprep.subr.mxu0 0.0
    %403 = vmatpush1.msra.mxu0 %v308
    %404 = vmatprep.subr.mxu0 0.0
    %405 = vmatpush1.msra.mxu0 %v309
    %406 = vmatprep.subr.mxu0 0.0
    %407 = vmatpush1.msra.mxu0 %v310
    %408 = vmatprep.subr.mxu0 0.0
    %409 = vmatpush1.msra.mxu0 %v311
    %410 = vmatprep.subr.mxu0 0.0
    %411 = vmatpush1.msra.mxu0 %v312
    %412 = vmatprep.subr.mxu0 0.0
    %413 = vmatpush1.msra.mxu0 %v313
    %414 = vmatprep.subr.mxu0 0.0
    %415 = vmatpush1.msra.mxu0 %v314
    %416 = vmatprep.subr.mxu0 0.0
    %417 = vmatpush1.msra.mxu0 %v315
    %418 = vmatprep.subr.mxu0 0.0
    %419 = vmatpush1.msra.mxu0 %v316
    %420 = vmatprep.subr.mxu0 0.0
    %421 = vmatpush1.msra.mxu0 %v317
    %422 = vmatprep.subr.mxu0 0.0
    %423 = vmatpush1.msra.mxu0 %v318
    %424 = vmatprep.subr.mxu0 0.0
    %425 = vmatpush1.msra.mxu0 0.0
    %426 = vmatprep.subr.mxu0 0.0
    %427 = vmatpush1.msra.mxu0 0.0
    %428 = vmatprep.subr.mxu0 0.0
    %429 = vmatpush1.msra.mxu0 0.0
    %430 = vmatprep.subr.mxu0 0.0
    %431 = vmatpush1.msra.mxu0 0.0
    %432 = vmatprep.subr.mxu0 0.0
    %433 = vmatpush1.msra.mxu0 0.0
    %434 = vmatprep.subr.mxu0 0.0
    %435 = vmatpush1.msra.mxu0 0.0
    %436 = vmatprep.subr.mxu0 0.0
    %437 = vmatpush1.msra.mxu0 0.0
    %438 = vmatprep.subr.mxu0 0.0
    %439 = vmatpush1.msra.mxu0 0.0
    %440 = vmatprep.subr.mxu0 0.0
    %441 = vmatpush1.msra.mxu0 0.0
    %442 = vmatprep.subr.mxu0 0.0
    %443 = vmatpush1.msra.mxu0 0.0
    %444 = vmatprep.subr.mxu0 0.0
    %445 = vmatpush1.msra.mxu0 0.0
    %446 = vmatprep.subr.mxu0 0.0
    %447 = vmatpush1.msra.mxu0 0.0
    %448 = vmatprep.subr.mxu0 0.0
    %449 = vmatpush1.msra.mxu0 0.0
    %450 = vmatprep.subr.mxu0 0.0
    %451 = vmatpush1.msra.mxu0 0.0
    %452 = vmatprep.subr.mxu0 0.0
    %453 = vmatpush1.msra.mxu0 0.0
    %454 = vmatprep.subr.mxu0 0.0
    %455 = vmatpush1.msra.mxu0 0.0
    %456 = vmatprep.mubr.f32.mxu0 0.0
    %457 = vmatmul.mubr.f32.gmra.mrb[0].mxu0 %v391
    %v458 = vpop.f32.mrb[0].mxu0
    %v459 = vadd.f32 0.0, %v458
    %v460 = vpop.f32.mrb[0].mxu0
    %461 = vdwg.mxu0
    %v462 = vmul.f32 %v459, 0.03125
    %v463 = vadd.f32 %v462, 1e-05
    %v464 = vrsqrt.pop %v463
    %v465 = vmul.f32 %v390, %v464
    %v466 = vld [vmem:[%s4 + $0x1] sm:$0x1]
    %v467 = vlaneseq
    %v468 = vshrl.u32 %v467, 7
    %v469 = vsub.s32 0, %v468
    %v470 = vrot.slane %v466, %v469
    %v471 = vmul.f32 %v465, %v470
    %v472 = vld [vmem:[%s4 + $0x2] sm:$0x1]
    %v473 = vlaneseq
    %v474 = vshrl.u32 %v473, 7
    %v475 = vsub.s32 0, %v474
    %v476 = vrot.slane %v472, %v475
    %v477 = vadd.f32 %v471, %v476
    %478 = vst [vmem:[#allocation10] sm:$0xff] %v477
    // Predicated region
    $region42: #{tpu_custom_call.1} parent=1 // pred_check
      _
    $region43: #{tpu_custom_call.1} parent=1 // pred_check_branch
      %480 = sbr.rel (0) target = $region45
    $region44: #{tpu_custom_call.1} parent=1 // pred_region
      %s482 = ssub.s32 128, 128
      %483 = vsyncadd [#allocation4], %s482
      %s485 = sshll.u32 [#allocation10], 4
      %s486 = int_to_ptr.vmem [resolvable:$true] %s485
      %488 = dma.vmem_to_hbm [thread:$0]  %s486, 128, %s6, [#allocation4]
    $region45: #{tpu_custom_call.1} parent=1 // pred_fallthru
      _
    // Predicated region
    $region46: #{tpu_custom_call.1} parent=1 // pred_check
      _
    $region47: #{tpu_custom_call.1} parent=1 // pred_check_branch
      %490 = sbr.rel (0) target = $region49
    $region48: #{tpu_custom_call.1} parent=1 // pred_region
      %491 = dma.done [#allocation4], 128
    $region49: #{tpu_custom_call.1} parent=1 // pred_fallthru
      _
    %492 = vsyncpa [#allocation3], 1
    %493 = vsyncpa [#allocation6], 1
    %494 = vsyncpa [#allocation9], 1
    %495 = vsyncpa [#allocation4], 1

</llo_original>
